<compile_context>
chip_gen: v5e
topology: v5e:2x2
jax: 0.10.0
libtpu: 0.0.40
codegen_flags: <defaults>
</compile_context>

<pallas_src>
import jax
import jax.numpy as jnp
from jax.experimental import pallas as pl
from jax.experimental.pallas import tpu as pltpu


def _round_up(n, m):
    return ((n + m - 1) // m) * m


# --------------------------------------------------------------------------- #
# One-time weight preparation (hoist out of the hot path / cache the result). #
# --------------------------------------------------------------------------- #
def prepare_mlp_params(w1, b1, w2, b2, *, lane=128):
    """Cast weights to bf16 and lane-pad feature dims to multiples of 128.

    Call ONCE and reuse the result across forward calls; doing this per call
    streams every f32 weight through HBM (read f32 + write bf16) before the
    kernel even starts.
    """
    d_in, h = w1.shape
    d_out = w2.shape[1]
    hp = _round_up(h, lane)
    dp = _round_up(d_out, lane)

    if hp == h:
        w1p = w1.astype(jnp.bfloat16)
        b1p = b1.astype(jnp.float32).reshape(1, h)
    else:
        # Padded b1 columns must stay exactly 0 (tanh(0) = 0) and the matching
        # w2 rows must be 0 so the padding is numerically exact.
        w1p = jnp.zeros((d_in, hp), jnp.bfloat16).at[:, :h].set(w1.astype(jnp.bfloat16))
        b1p = jnp.zeros((1, hp), jnp.float32).at[:, :h].set(
            b1.astype(jnp.float32).reshape(1, h))

    if hp == h and dp == d_out:
        w2p = w2.astype(jnp.bfloat16)
        b2p = b2.astype(jnp.float32).reshape(1, d_out)
    else:
        w2p = jnp.zeros((hp, dp), jnp.bfloat16).at[:h, :d_out].set(w2.astype(jnp.bfloat16))
        b2p = jnp.zeros((1, dp), jnp.float32).at[:, :d_out].set(
            b2.astype(jnp.float32).reshape(1, d_out))

    return {"w1": w1p, "b1": b1p, "w2": w2p, "b2": b2p, "d_out": d_out}


# --------------------------------------------------------------------------- #
# Kernel: grid = (batch tiles, hidden tiles).                                 #
# Per step: h_j = tanh(x_i @ w1[:, j] + b1[j]); acc += h_j @ w2[j, :];        #
# at the last hidden tile: out = acc + b2.                                    #
# --------------------------------------------------------------------------- #
def mlp_kernel(x_ref, w1_ref, b1_ref, w2_ref, b2_ref, o_ref, acc_ref):
    j = pl.program_id(1)

    @pl.when(j == 0)
    def _():
        acc_ref[...] = jnp.zeros_like(acc_ref)

    # bf16 MXU inputs, f32 accumulation; bias + tanh in f32 (v5e-safe).
    x = x_ref[...].astype(jnp.bfloat16)
    h = jnp.dot(x, w1_ref[...], preferred_element_type=jnp.float32) + b1_ref[...]
    h = jnp.tanh(h)
    acc_ref[...] += jnp.dot(h.astype(jnp.bfloat16), w2_ref[...],
                            preferred_element_type=jnp.float32)

    @pl.when(j == pl.num_programs(1) - 1)
    def _():
        o_ref[...] = (acc_ref[...] + b2_ref[...]).astype(o_ref.dtype)


def mlp_forward(x, params, *, block_b=None, block_h=None):
    """x: (B, D_in); params: output of prepare_mlp_params."""
    w1, b1, w2, b2 = params["w1"], params["b1"], params["w2"], params["b2"]
    d_out = params["d_out"]
    B, D_in = x.shape
    Hp = w1.shape[1]
    Dp = w2.shape[1]

    # ---- batch tiling (no x padding: ragged last tile is masked by Pallas) --
    if block_b is None:
        if B <= 256:
            block_b = B  # single grid step, zero copies
        else:
            # >= 2 grid steps so the "parallel" batch axis can shard across the
            # two TensorCores on v7x; cap tiles at 512 rows.
            block_b = min(512, _round_up(pl.cdiv(B, 2), 8))
    nb = pl.cdiv(B, block_b)

    # ---- hidden tiling (keeps weight tiles small enough for v7x VMEM) ------
    if block_h is None:
        if Hp <= 1024:
            block_h = Hp
        else:
            block_h = 128
            for cand in range(512, 0, -128):   # largest lane-multiple divisor <= 512
                if Hp % cand == 0:
                    block_h = cand
                    break
    assert Hp % block_h == 0
    nh = Hp // block_h

    xb = x.dtype.itemsize
    ob = xb

    # ---- explicit VMEM budget (footprint + headroom) ------------------------
    footprint = (
        2 * block_b * D_in * xb        # x tiles (<=2 buffers)
        + 2 * D_in * block_h * 2       # w1 tiles (bf16)
        + 2 * block_h * 4              # b1 tiles
        + 2 * block_h * Dp * 2         # w2 tiles (bf16)
        + Dp * 4                       # b2 (single-buffered)
        + 2 * block_b * Dp * ob        # out tiles
        + block_b * Dp * 4             # f32 accumulator
    )
    vmem_limit = int(min(100 << 20, max(32 << 20, footprint + (4 << 20))))

    cost = pl.CostEstimate(
        flops=2 * B * (D_in * Hp + Hp * Dp),
        transcendentals=B * Hp,
        bytes_accessed=(B * D_in * xb                   # x
                        + D_in * Hp * 2 + Hp * Dp * 2   # bf16 weights
                        + (Hp + Dp) * 4                 # biases
                        + B * Dp * ob),                 # output
    )

    def run(use_single_buffer):
        def spec(shape, index_map, constant):
            # Constant-index blocks don't need double buffering; halving their
            # VMEM matters most on v7x (64 MiB).
            if use_single_buffer and constant:
                return pl.BlockSpec(shape, index_map, pipeline_mode=pl.Buffered(1))
            return pl.BlockSpec(shape, index_map)

        in_specs = [
            spec((block_b, D_in), lambda i, j: (i, 0), constant=(nb == 1)),   # x
            spec((D_in, block_h), lambda i, j: (0, j), constant=(nh == 1)),   # w1
            spec((1, block_h), lambda i, j: (0, j), constant=(nh == 1)),      # b1
            spec((block_h, Dp), lambda i, j: (j, 0), constant=(nh == 1)),     # w2
            spec((1, Dp), lambda i, j: (0, 0), constant=True),                # b2
        ]
        out_spec = spec((block_b, Dp), lambda i, j: (i, 0), constant=(nb == 1))

        out = pl.pallas_call(
            mlp_kernel,
            out_shape=jax.ShapeDtypeStruct((B, Dp), x.dtype),
            grid_spec=pltpu.PrefetchScalarGridSpec(
                num_scalar_prefetch=0,
                grid=(nb, nh),
                in_specs=in_specs,
                out_specs=out_spec,
                scratch_shapes=[pltpu.VMEM((block_b, Dp), jnp.float32)],
            ),
            compiler_params=pltpu.CompilerParams(
                dimension_semantics=("parallel", "arbitrary"),
                vmem_limit_bytes=vmem_limit,
            ),
            cost_estimate=cost,
        )(x, w1, b1, w2, b2)
        return jax.block_until_ready(out)

    try:
        out = run(use_single_buffer=True)
    except Exception:
        # pipeline_mode=pl.Buffered(1) not supported on this jax/Mosaic build;
        # fall back to default (double-buffered) BlockSpecs.
        out = run(use_single_buffer=False)

    # Strip lane padding of the output features only if it exists.
    return out if Dp == d_out else out[:, :d_out]


if __name__ == "__main__":
    # Small shapes consistent with MLP(input_dim=32, hidden_dim=64, output_dim=8).
    B, D_in, H, D_out = 16, 32, 64, 8

    key = jax.random.PRNGKey(0)
    kx, k1, kb1, k2, kb2 = jax.random.split(key, 5)

    x = jax.random.normal(kx, (B, D_in), dtype=jnp.float32)
    w1 = jax.random.normal(k1, (D_in, H), dtype=jnp.float32) * 0.1
    b1 = jax.random.normal(kb1, (1, H), dtype=jnp.float32) * 0.1
    w2 = jax.random.normal(k2, (H, D_out), dtype=jnp.float32) * 0.1
    b2 = jax.random.normal(kb2, (1, D_out), dtype=jnp.float32) * 0.1

    # One-time weight prep (hoisted out of the per-call hot path).
    params = prepare_mlp_params(w1, b1, w2, b2)
    params = jax.tree_util.tree_map(
        lambda a: jax.block_until_ready(a) if isinstance(a, jax.Array) else a, params)

    out = mlp_forward(x, params)
    out = jax.block_until_ready(out)

    # Pure-JAX f32 reference of the forward semantics.
    ref = jnp.tanh(x @ w1 + b1) @ w2 + b2
    assert out.shape == (B, D_out)
    # bf16 MXU inputs with f32 accumulation -> loose tolerance vs f32 reference.
    assert jnp.allclose(out, ref, atol=2e-2, rtol=2e-2), "mismatch vs reference"

    print("KERNEL_OK")
</pallas_src>

<mosaic_0001>
module attributes {stable_mosaic.version = 11 : i64} {
  func.func @mlp_kernel(%arg0: i32, %arg1: i32, %arg2: memref<16x32xf32, #tpu.memory_space<vmem>>, %arg3: memref<32x128xbf16, #tpu.memory_space<vmem>>, %arg4: memref<1x128xf32, #tpu.memory_space<vmem>>, %arg5: memref<128x128xbf16, #tpu.memory_space<vmem>>, %arg6: memref<1x128xf32, #tpu.memory_space<vmem>>, %arg7: memref<16x128xf32, #tpu.memory_space<vmem>>, %arg8: memref<16x128xf32, #tpu.memory_space<vmem>>) attributes {dimension_semantics = [#tpu.dimension_semantics<parallel>, #tpu.dimension_semantics<arbitrary>], iteration_bounds = array<i64: 1, 1>, scalar_prefetch = 0 : i64, scratch_operands = 1 : i64, tpu.core_type = #tpu.core_type<tc>, window_params = [{pipeline_mode = #tpu.pipeline_mode<synchronous>, transform_indices = @transform_0, window_bounds = array<i64: 16, 32>}, {pipeline_mode = #tpu.pipeline_mode<synchronous>, transform_indices = @transform_1, window_bounds = array<i64: 32, 128>}, {pipeline_mode = #tpu.pipeline_mode<synchronous>, transform_indices = @transform_2, window_bounds = array<i64: 1, 128>}, {pipeline_mode = #tpu.pipeline_mode<synchronous>, transform_indices = @transform_3, window_bounds = array<i64: 128, 128>}, {pipeline_mode = #tpu.pipeline_mode<synchronous>, transform_indices = @transform_4, window_bounds = array<i64: 1, 128>}, {pipeline_mode = #tpu.pipeline_mode<synchronous>, transform_indices = @transform_5, window_bounds = array<i64: 16, 128>}]} {
    %c0_i32 = arith.constant 0 : i32
    %0 = arith.cmpi eq, %arg1, %c0_i32 : i32
    %1 = arith.extui %0 : i1 to i32
    %c0_i32_0 = arith.constant 0 : i32
    %2 = arith.cmpi ne, %1, %c0_i32_0 : i32
    scf.if %2 {
      %cst_15 = arith.constant 0.000000e+00 : f32
      %20 = vector.broadcast %cst_15 : f32 to vector<16x128xf32>
      %c0_16 = arith.constant 0 : index
      %c0_17 = arith.constant 0 : index
      %21 = vector.load %arg8[%c0_16, %c0_17] : memref<16x128xf32, #tpu.memory_space<vmem>>, vector<16x128xf32>
      tpu.vector_store %arg8[%c0_16, %c0_17], %20 {strides = array<i32>} : memref<16x128xf32, #tpu.memory_space<vmem>>, vector<16x128xf32>,
    } else {
    }
    %c0 = arith.constant 0 : index
    %c0_1 = arith.constant 0 : index
    %3 = vector.load %arg2[%c0, %c0_1] : memref<16x32xf32, #tpu.memory_space<vmem>>, vector<16x32xf32>
    %4 = arith.truncf %3 : vector<16x32xf32> to vector<16x32xbf16>
    %c0_2 = arith.constant 0 : index
    %c0_3 = arith.constant 0 : index
    %5 = vector.load %arg3[%c0_2, %c0_3] : memref<32x128xbf16, #tpu.memory_space<vmem>>, vector<32x128xbf16>
    %cst = arith.constant dense<0.000000e+00> : vector<16x128xf32>
    %6 = tpu.matmul %4, %5, %cst {dimension_numbers = #tpu.dot_dimension_numbers<[1], [0], [0], [1], [0, 0, 1, 1], [], []>} : vector<16x32xbf16>, vector<32x128xbf16>, vector<16x128xf32> -> vector<16x128xf32>
    %c0_4 = arith.constant 0 : index
    %c0_5 = arith.constant 0 : index
    %7 = vector.load %arg4[%c0_4, %c0_5] : memref<1x128xf32, #tpu.memory_space<vmem>>, vector<1x128xf32>
    %8 = vector.broadcast %7 : vector<1x128xf32> to vector<16x128xf32>
    %9 = arith.addf %6, %8 : vector<16x128xf32>
    %10 = math.tanh %9 : vector<16x128xf32>
    %c0_6 = arith.constant 0 : index
    %c0_7 = arith.constant 0 : index
    %11 = vector.load %arg8[%c0_6, %c0_7] : memref<16x128xf32, #tpu.memory_space<vmem>>, vector<16x128xf32>
    %12 = arith.truncf %10 : vector<16x128xf32> to vector<16x128xbf16>
    %c0_8 = arith.constant 0 : index
    %c0_9 = arith.constant 0 : index
    %13 = vector.load %arg5[%c0_8, %c0_9] : memref<128x128xbf16, #tpu.memory_space<vmem>>, vector<128x128xbf16>
    %cst_10 = arith.constant dense<0.000000e+00> : vector<16x128xf32>
    %14 = tpu.matmul %12, %13, %cst_10 {dimension_numbers = #tpu.dot_dimension_numbers<[1], [0], [0], [1], [0, 0, 1, 1], [], []>} : vector<16x128xbf16>, vector<128x128xbf16>, vector<16x128xf32> -> vector<16x128xf32>
    %15 = arith.addf %11, %14 : vector<16x128xf32>
    %c0_11 = arith.constant 0 : index
    %c0_12 = arith.constant 0 : index
    %16 = vector.load %arg8[%c0_11, %c0_12] : memref<16x128xf32, #tpu.memory_space<vmem>>, vector<16x128xf32>
    tpu.vector_store %arg8[%c0_11, %c0_12], %15 {strides = array<i32>} : memref<16x128xf32, #tpu.memory_space<vmem>>, vector<16x128xf32>,
    %c0_i32_13 = arith.constant 0 : i32
    %17 = arith.cmpi eq, %arg1, %c0_i32_13 : i32
    %18 = arith.extui %17 : i1 to i32
    %c0_i32_14 = arith.constant 0 : i32
    %19 = arith.cmpi ne, %18, %c0_i32_14 : i32
    scf.if %19 {
      %c0_15 = arith.constant 0 : index
      %c0_16 = arith.constant 0 : index
      %20 = vector.load %arg8[%c0_15, %c0_16] : memref<16x128xf32, #tpu.memory_space<vmem>>, vector<16x128xf32>
      %c0_17 = arith.constant 0 : index
      %c0_18 = arith.constant 0 : index
      %21 = vector.load %arg6[%c0_17, %c0_18] : memref<1x128xf32, #tpu.memory_space<vmem>>, vector<1x128xf32>
      %22 = vector.broadcast %21 : vector<1x128xf32> to vector<16x128xf32>
      %23 = arith.addf %20, %22 : vector<16x128xf32>
      %c0_19 = arith.constant 0 : index
      %c0_20 = arith.constant 0 : index
      %24 = vector.load %arg7[%c0_19, %c0_20] : memref<16x128xf32, #tpu.memory_space<vmem>>, vector<16x128xf32>
      tpu.vector_store %arg7[%c0_19, %c0_20], %23 {strides = array<i32>} : memref<16x128xf32, #tpu.memory_space<vmem>>, vector<16x128xf32>,
    } else {
    }
    return
  }
  func.func @transform_0(%arg0: i32, %arg1: i32) -> (i32, i32) {
    %c0_i32 = arith.constant 0 : i32
    %c0_i32_0 = arith.constant 0 : i32
    return %arg0, %c0_i32 : i32, i32
  }
  func.func @transform_1(%arg0: i32, %arg1: i32) -> (i32, i32) {
    %c0_i32 = arith.constant 0 : i32
    %c0_i32_0 = arith.constant 0 : i32
    return %c0_i32, %arg1 : i32, i32
  }
  func.func @transform_2(%arg0: i32, %arg1: i32) -> (i32, i32) {
    %c0_i32 = arith.constant 0 : i32
    %c0_i32_0 = arith.constant 0 : i32
    return %c0_i32, %arg1 : i32, i32
  }
  func.func @transform_3(%arg0: i32, %arg1: i32) -> (i32, i32) {
    %c0_i32 = arith.constant 0 : i32
    %c0_i32_0 = arith.constant 0 : i32
    return %arg1, %c0_i32 : i32, i32
  }
  func.func @transform_4(%arg0: i32, %arg1: i32) -> (i32, i32) {
    %c0_i32 = arith.constant 0 : i32
    %c0_i32_0 = arith.constant 0 : i32
    %c0_i32_1 = arith.constant 0 : i32
    return %c0_i32, %c0_i32_0 : i32, i32
  }
  func.func @transform_5(%arg0: i32, %arg1: i32) -> (i32, i32) {
    %c0_i32 = arith.constant 0 : i32
    %c0_i32_0 = arith.constant 0 : i32
    return %arg0, %c0_i32 : i32, i32
  }
}

module attributes {stable_mosaic.version = 11 : i64} {
  func.func @mlp_kernel(%arg0: i32, %arg1: i32, %arg2: memref<16x32xf32, #tpu.memory_space<vmem>>, %arg3: memref<32x128xbf16, #tpu.memory_space<vmem>>, %arg4: memref<1x128xf32, #tpu.memory_space<vmem>>, %arg5: memref<128x128xbf16, #tpu.memory_space<vmem>>, %arg6: memref<1x128xf32, #tpu.memory_space<vmem>>, %arg7: memref<16x128xf32, #tpu.memory_space<vmem>>, %arg8: memref<16x128xf32, #tpu.memory_space<vmem>>) attributes {dimension_semantics = [#tpu.dimension_semantics<parallel>, #tpu.dimension_semantics<arbitrary>], iteration_bounds = array<i64: 1, 1>, scalar_prefetch = 0 : i64, scratch_operands = 1 : i64, tpu.core_type = #tpu.core_type<tc>, window_params = [{transform_indices = @transform_0, window_bounds = array<i64: 16, 32>}, {transform_indices = @transform_1, window_bounds = array<i64: 32, 128>}, {transform_indices = @transform_2, window_bounds = array<i64: 1, 128>}, {transform_indices = @transform_3, window_bounds = array<i64: 128, 128>}, {pipeline_mode = #tpu.pipeline_mode<synchronous>, transform_indices = @transform_4, window_bounds = array<i64: 1, 128>}, {transform_indices = @transform_5, window_bounds = array<i64: 16, 128>}]} {
    %c0_i32 = arith.constant 0 : i32
    %0 = arith.cmpi eq, %arg1, %c0_i32 : i32
    %1 = arith.extui %0 : i1 to i32
    %c0_i32_0 = arith.constant 0 : i32
    %2 = arith.cmpi ne, %1, %c0_i32_0 : i32
    scf.if %2 {
      %cst_15 = arith.constant 0.000000e+00 : f32
      %20 = vector.broadcast %cst_15 : f32 to vector<16x128xf32>
      %c0_16 = arith.constant 0 : index
      %c0_17 = arith.constant 0 : index
      %21 = vector.load %arg8[%c0_16, %c0_17] : memref<16x128xf32, #tpu.memory_space<vmem>>, vector<16x128xf32>
      tpu.vector_store %arg8[%c0_16, %c0_17], %20 {strides = array<i32>} : memref<16x128xf32, #tpu.memory_space<vmem>>, vector<16x128xf32>,
    } else {
    }
    %c0 = arith.constant 0 : index
    %c0_1 = arith.constant 0 : index
    %3 = vector.load %arg2[%c0, %c0_1] : memref<16x32xf32, #tpu.memory_space<vmem>>, vector<16x32xf32>
    %4 = arith.truncf %3 : vector<16x32xf32> to vector<16x32xbf16>
    %c0_2 = arith.constant 0 : index
    %c0_3 = arith.constant 0 : index
    %5 = vector.load %arg3[%c0_2, %c0_3] : memref<32x128xbf16, #tpu.memory_space<vmem>>, vector<32x128xbf16>
    %cst = arith.constant dense<0.000000e+00> : vector<16x128xf32>
    %6 = tpu.matmul %4, %5, %cst {dimension_numbers = #tpu.dot_dimension_numbers<[1], [0], [0], [1], [0, 0, 1, 1], [], []>} : vector<16x32xbf16>, vector<32x128xbf16>, vector<16x128xf32> -> vector<16x128xf32>
    %c0_4 = arith.constant 0 : index
    %c0_5 = arith.constant 0 : index
    %7 = vector.load %arg4[%c0_4, %c0_5] : memref<1x128xf32, #tpu.memory_space<vmem>>, vector<1x128xf32>
    %8 = vector.broadcast %7 : vector<1x128xf32> to vector<16x128xf32>
    %9 = arith.addf %6, %8 : vector<16x128xf32>
    %10 = math.tanh %9 : vector<16x128xf32>
    %c0_6 = arith.constant 0 : index
    %c0_7 = arith.constant 0 : index
    %11 = vector.load %arg8[%c0_6, %c0_7] : memref<16x128xf32, #tpu.memory_space<vmem>>, vector<16x128xf32>
    %12 = arith.truncf %10 : vector<16x128xf32> to vector<16x128xbf16>
    %c0_8 = arith.constant 0 : index
    %c0_9 = arith.constant 0 : index
    %13 = vector.load %arg5[%c0_8, %c0_9] : memref<128x128xbf16, #tpu.memory_space<vmem>>, vector<128x128xbf16>
    %cst_10 = arith.constant dense<0.000000e+00> : vector<16x128xf32>
    %14 = tpu.matmul %12, %13, %cst_10 {dimension_numbers = #tpu.dot_dimension_numbers<[1], [0], [0], [1], [0, 0, 1, 1], [], []>} : vector<16x128xbf16>, vector<128x128xbf16>, vector<16x128xf32> -> vector<16x128xf32>
    %15 = arith.addf %11, %14 : vector<16x128xf32>
    %c0_11 = arith.constant 0 : index
    %c0_12 = arith.constant 0 : index
    %16 = vector.load %arg8[%c0_11, %c0_12] : memref<16x128xf32, #tpu.memory_space<vmem>>, vector<16x128xf32>
    tpu.vector_store %arg8[%c0_11, %c0_12], %15 {strides = array<i32>} : memref<16x128xf32, #tpu.memory_space<vmem>>, vector<16x128xf32>,
    %c0_i32_13 = arith.constant 0 : i32
    %17 = arith.cmpi eq, %arg1, %c0_i32_13 : i32
    %18 = arith.extui %17 : i1 to i32
    %c0_i32_14 = arith.constant 0 : i32
    %19 = arith.cmpi ne, %18, %c0_i32_14 : i32
    scf.if %19 {
      %c0_15 = arith.constant 0 : index
      %c0_16 = arith.constant 0 : index
      %20 = vector.load %arg8[%c0_15, %c0_16] : memref<16x128xf32, #tpu.memory_space<vmem>>, vector<16x128xf32>
      %c0_17 = arith.constant 0 : index
      %c0_18 = arith.constant 0 : index
      %21 = vector.load %arg6[%c0_17, %c0_18] : memref<1x128xf32, #tpu.memory_space<vmem>>, vector<1x128xf32>
      %22 = vector.broadcast %21 : vector<1x128xf32> to vector<16x128xf32>
      %23 = arith.addf %20, %22 : vector<16x128xf32>
      %c0_19 = arith.constant 0 : index
      %c0_20 = arith.constant 0 : index
      %24 = vector.load %arg7[%c0_19, %c0_20] : memref<16x128xf32, #tpu.memory_space<vmem>>, vector<16x128xf32>
      tpu.vector_store %arg7[%c0_19, %c0_20], %23 {strides = array<i32>} : memref<16x128xf32, #tpu.memory_space<vmem>>, vector<16x128xf32>,
    } else {
    }
    return
  }
  func.func @transform_0(%arg0: i32, %arg1: i32) -> (i32, i32) {
    %c0_i32 = arith.constant 0 : i32
    %c0_i32_0 = arith.constant 0 : i32
    return %arg0, %c0_i32 : i32, i32
  }
  func.func @transform_1(%arg0: i32, %arg1: i32) -> (i32, i32) {
    %c0_i32 = arith.constant 0 : i32
    %c0_i32_0 = arith.constant 0 : i32
    return %c0_i32, %arg1 : i32, i32
  }
  func.func @transform_2(%arg0: i32, %arg1: i32) -> (i32, i32) {
    %c0_i32 = arith.constant 0 : i32
    %c0_i32_0 = arith.constant 0 : i32
    return %c0_i32, %arg1 : i32, i32
  }
  func.func @transform_3(%arg0: i32, %arg1: i32) -> (i32, i32) {
    %c0_i32 = arith.constant 0 : i32
    %c0_i32_0 = arith.constant 0 : i32
    return %arg1, %c0_i32 : i32, i32
  }
  func.func @transform_4(%arg0: i32, %arg1: i32) -> (i32, i32) {
    %c0_i32 = arith.constant 0 : i32
    %c0_i32_0 = arith.constant 0 : i32
    %c0_i32_1 = arith.constant 0 : i32
    return %c0_i32, %c0_i32_0 : i32, i32
  }
  func.func @transform_5(%arg0: i32, %arg1: i32) -> (i32, i32) {
    %c0_i32 = arith.constant 0 : i32
    %c0_i32_0 = arith.constant 0 : i32
    return %arg0, %c0_i32 : i32, i32
  }
}

</mosaic_0001>

<llo_original>
// kernel: tpu_custom_call.1
$region0: #{tpu_custom_call.1}
  #allocation0 [shape = 'u32[]', space=smem, size = 0x4, offset = 0x4, fixed_abs, tag = 'smem constant byte address 0x4 - core index']
  #allocation1 [shape = 'u32[72,128]{1,0:T(1,128)}', space=vmem, size = 0x9000, scoped, tag = 'internal scratch']
  #allocation2 [shape = 'f32[16,128]{1,0:T(8,128)}', space=vmem, size = 0x2000, scoped, tag = 'scratch operand']
  %s0 = inlined_call_operand.hbm [shape: f32[16,32], index: 0, kind: input, shape index: {}]
  %s1 = inlined_call_operand.hbm [shape: bf16[32,128], index: 1, kind: input, shape index: {}]
  %s2 = inlined_call_operand.vmem [shape: f32[1,128], index: 2, kind: input, shape index: {}]
  %s3 = inlined_call_operand.hbm [shape: bf16[128,128], index: 3, kind: input, shape index: {}]
  %s4 = inlined_call_operand.vmem [shape: f32[1,128], index: 4, kind: input, shape index: {}]
  %s5 = inlined_call_operand.hbm [shape: f32[16,128], index: 5, kind: output, shape index: {}]
  %s6 = sld [smem:[#allocation0]]
  $region50: #{tpu_custom_call.1} parent=0
    _
  %s8 = ssub.s32 1, %s6
  %s9 = scalar_select 0, %s8, %s6
  $region1: #{tpu_custom_call.1} parent=0
    #allocation3 [shape = 'u8[8192]{0}', space=vmem, size = 0x2000, scoped, tag = 'input window, operand 0, single buffered']
    #allocation4 [shape = 's32[1]{0}', space=sflag, size = 0x4, scoped, tag = 'scoped memory for tpu_custom_call.1']
    #allocation5 [shape = 's32[1]{0}', space=sflag, size = 0x4, scoped, tag = 'scoped memory for tpu_custom_call.1']
    #allocation6 [shape = 'u8[8192]{0}', space=vmem, size = 0x2000, scoped, tag = 'input window, operand 1, single buffered']
    #allocation7 [shape = 's32[1]{0}', space=sflag, size = 0x4, scoped, tag = 'scoped memory for tpu_custom_call.1']
    #allocation8 [shape = 'u8[32768]{0}', space=vmem, size = 0x8000, scoped, tag = 'input window, operand 3, single buffered']
    #allocation9 [shape = 'u8[8192]{0}', space=vmem, size = 0x2000, scoped, tag = 'output window, operand 0, single buffered']
    %10 = vsyncpa [#allocation4], 0
    %11 = vsyncpa [#allocation7], 0
    %12 = vsyncpa [#allocation5], 0
    // Predicated region
    $region2: #{tpu_custom_call.1} parent=1 // pred_check
      _
    $region3: #{tpu_custom_call.1} parent=1 // pred_check_branch
      %14 = sbr.rel (0) target = $region5
    $region4: #{tpu_custom_call.1} parent=1 // pred_region
      %16 = vsyncadd [#allocation4], 0
      %s17 = sshll.u32 %s0, 4
      %s18 = int_to_ptr.hbm [resolvable:$true] %s17
      %s19 = sshll.u32 [#allocation3], 4
      %s20 = int_to_ptr.vmem [resolvable:$true] %s19
      %25 = dma.hbm_to_vmem [thread:$0]  %s18, 256, %s20, [#allocation4], 128, 128, 8
    $region5: #{tpu_custom_call.1} parent=1 // pred_fallthru
      _
    // Predicated region
    $region6: #{tpu_custom_call.1} parent=1 // pred_check
      _
    $region7: #{tpu_custom_call.1} parent=1 // pred_check_branch
      %27 = sbr.rel (0) target = $region9
    $region8: #{tpu_custom_call.1} parent=1 // pred_region
      %29 = vsyncadd [#allocation7], 0
      %s30 = sshll.u32 %s1, 4
      %s31 = int_to_ptr.hbm [resolvable:$true] %s30
      %s32 = sshll.u32 [#allocation6], 4
      %s33 = int_to_ptr.vmem [resolvable:$true] %s32
      %38 = dma.hbm_to_vmem [thread:$0]  %s31, 256, %s33, [#allocation7], 64, 64, 4
    $region9: #{tpu_custom_call.1} parent=1 // pred_fallthru
      _
    // Predicated region
    $region10: #{tpu_custom_call.1} parent=1 // pred_check
      _
    $region11: #{tpu_custom_call.1} parent=1 // pred_check_branch
      %40 = sbr.rel (0) target = $region13
    $region12: #{tpu_custom_call.1} parent=1 // pred_region
      _
    $region13: #{tpu_custom_call.1} parent=1 // pred_fallthru
      _
    // Predicated region
    $region14: #{tpu_custom_call.1} parent=1 // pred_check
      _
    $region15: #{tpu_custom_call.1} parent=1 // pred_check_branch
      %42 = sbr.rel (0) target = $region17
    $region16: #{tpu_custom_call.1} parent=1 // pred_region
      %44 = vsyncadd [#allocation7], 0
      %s45 = sshll.u32 %s3, 4
      %s46 = int_to_ptr.hbm [resolvable:$true] %s45
      %s47 = sshll.u32 [#allocation8], 4
      %s48 = int_to_ptr.vmem [resolvable:$true] %s47
      %53 = dma.hbm_to_vmem [thread:$0]  %s46, 1024, %s48, [#allocation7], 64, 64, 4
    $region17: #{tpu_custom_call.1} parent=1 // pred_fallthru
      _
    // Predicated region
    $region18: #{tpu_custom_call.1} parent=1 // pred_check
      _
    $region19: #{tpu_custom_call.1} parent=1 // pred_check_branch
      %55 = sbr.rel (0) target = $region21
    $region20: #{tpu_custom_call.1} parent=1 // pred_region
      _
    $region21: #{tpu_custom_call.1} parent=1 // pred_fallthru
      _
    // Predicated region
    $region22: #{tpu_custom_call.1} parent=1 // pred_check
      _
    $region23: #{tpu_custom_call.1} parent=1 // pred_check_branch
      %57 = sbr.rel (0) target = $region25
    $region24: #{tpu_custom_call.1} parent=1 // pred_region
      %59 = dma.done [#allocation4], 256
    $region25: #{tpu_custom_call.1} parent=1 // pred_fallthru
      _
    // Predicated region
    $region26: #{tpu_custom_call.1} parent=1 // pred_check
      _
    $region27: #{tpu_custom_call.1} parent=1 // pred_check_branch
      %61 = sbr.rel (0) target = $region29
    $region28: #{tpu_custom_call.1} parent=1 // pred_region
      %63 = dma.done [#allocation7], 256
    $region29: #{tpu_custom_call.1} parent=1 // pred_fallthru
      _
    // Predicated region
    $region30: #{tpu_custom_call.1} parent=1 // pred_check
      _
    $region31: #{tpu_custom_call.1} parent=1 // pred_check_branch
      %65 = sbr.rel (0) target = $region33
    $region32: #{tpu_custom_call.1} parent=1 // pred_region
      %67 = dma.done [#allocation7], 1024
    $region33: #{tpu_custom_call.1} parent=1 // pred_fallthru
      _
    %p69 = scmp.eq.s32.totalorder 0, 0
    // Predicated region
    $region34: #{tpu_custom_call.1} parent=1 // pred_check
      %p70 = pneg %p69
    $region35: #{tpu_custom_call.1} parent=1 // pred_check_branch
      %72 = sbr.rel (%p70) target = $region37
    $region36: #{tpu_custom_call.1} parent=1 // pred_region
      %73 = vst [vmem:[#allocation2] sm:$0xff] 0.0
      %74 = vst [vmem:[#allocation2 + $0x8] sm:$0xff] 0.0
    $region37: #{tpu_custom_call.1} parent=1 // pred_fallthru
      _
    %v75 = vld [vmem:[#allocation3] sm:$0xff]
    %v76 = vld [vmem:[#allocation3 + $0x8] sm:$0xff]
    %v77 = vpack.c.bf16 %v76, %v75
    %v78 = vld [vmem:[#allocation6] sm:$0xf]
    %v79 = vld [vmem:[#allocation6 + $0x4] sm:$0xf]
    %v80 = vld [vmem:[#allocation6 + $0x8] sm:$0xf]
    %v81 = vld [vmem:[#allocation6 + $0xc] sm:$0xf]
    %v82 = vld [vmem:[%s2] sm:$0x1]
    %v84 = vperm.slane %v82, 0
    %v90 = vunpack.c.l.b16 %v78
    %v91 = vunpack.c.l.b16 %v79
    %v92 = vunpack.c.l.b16 %v80
    %v93 = vunpack.c.l.b16 %v81
    %v94 = vpack.c.b16 %v91, %v90
    %v95 = vpack.c.b16 %v93, %v92
    %vm98 = vcmask 261120
    %v100 = vsel %vm98, %v77, 0
    %102 = vmatpush.bf16.msra.mxu0 0
    %103 = vmatpush.bf16.msra.mxu0 0
    %104 = vmatpush.bf16.msra.mxu0 0
    %105 = vmatpush.bf16.msra.mxu0 0
    %106 = vmatpush.bf16.msra.mxu0 0
    %107 = vmatpush.bf16.msra.mxu0 0
    %108 = vmatpush.bf16.msra.mxu0 %v95
    %109 = vmatpush.bf16.msra.mxu0 %v94
    %110 = vmatmul.bf16.gmra.mxu0 %v100
    %v111 = vpop.f32.mrf.mxu0
    %v112 = vadd.f32 %v84, %v111
    %v113 = vpop.f32.mrf.mxu0
    %v114 = vadd.f32 %v84, %v113
    %115 = vdwg.mxu0
    %v116 = vtanh.pop %v112
    %v117 = vtanh.pop %v114
    %v118 = vld [vmem:[#allocation2] sm:$0xff]
    %v119 = vld [vmem:[#allocation2 + $0x8] sm:$0xff]
    %v120 = vpack.c.bf16 %v117, %v116
    %v121 = vld [vmem:[#allocation8] sm:$0xf]
    %v122 = vld [vmem:[#allocation8 + $0x4] sm:$0xf]
    %v123 = vld [vmem:[#allocation8 + $0x8] sm:$0xf]
    %v124 = vld [vmem:[#allocation8 + $0xc] sm:$0xf]
    %v125 = vld [vmem:[#allocation8 + $0x10] sm:$0xf]
    %v126 = vld [vmem:[#allocation8 + $0x14] sm:$0xf]
    %v127 = vld [vmem:[#allocation8 + $0x18] sm:$0xf]
    %v128 = vld [vmem:[#allocation8 + $0x1c] sm:$0xf]
    %v129 = vld [vmem:[#allocation8 + $0x20] sm:$0xf]
    %v130 = vld [vmem:[#allocation8 + $0x24] sm:$0xf]
    %v131 = vld [vmem:[#allocation8 + $0x28] sm:$0xf]
    %v132 = vld [vmem:[#allocation8 + $0x2c] sm:$0xf]
    %v133 = vld [vmem:[#allocation8 + $0x30] sm:$0xf]
    %v134 = vld [vmem:[#allocation8 + $0x34] sm:$0xf]
    %v135 = vld [vmem:[#allocation8 + $0x38] sm:$0xf]
    %v136 = vld [vmem:[#allocation8 + $0x3c] sm:$0xf]
    %v153 = vunpack.c.l.b16 %v121
    %v154 = vunpack.c.l.b16 %v122
    %v155 = vunpack.c.l.b16 %v123
    %v156 = vunpack.c.l.b16 %v124
    %v157 = vunpack.c.l.b16 %v125
    %v158 = vunpack.c.l.b16 %v126
    %v159 = vunpack.c.l.b16 %v127
    %v160 = vunpack.c.l.b16 %v128
    %v161 = vunpack.c.l.b16 %v129
    %v162 = vunpack.c.l.b16 %v130
    %v163 = vunpack.c.l.b16 %v131
    %v164 = vunpack.c.l.b16 %v132
    %v165 = vunpack.c.l.b16 %v133
    %v166 = vunpack.c.l.b16 %v134
    %v167 = vunpack.c.l.b16 %v135
    %v168 = vunpack.c.l.b16 %v136
    %v169 = vpack.c.b16 %v154, %v153
    %v170 = vpack.c.b16 %v156, %v155
    %v171 = vpack.c.b16 %v158, %v157
    %v172 = vpack.c.b16 %v160, %v159
    %v173 = vpack.c.b16 %v162, %v161
    %v174 = vpack.c.b16 %v164, %v163
    %v175 = vpack.c.b16 %v166, %v165
    %v176 = vpack.c.b16 %v168, %v167
    %185 = vmatpush.bf16.msra.mxu0 %v176
    %186 = vmatpush.bf16.msra.mxu0 %v175
    %187 = vmatpush.bf16.msra.mxu0 %v174
    %188 = vmatpush.bf16.msra.mxu0 %v173
    %189 = vmatpush.bf16.msra.mxu0 %v172
    %190 = vmatpush.bf16.msra.mxu0 %v171
    %191 = vmatpush.bf16.msra.mxu0 %v170
    %192 = vmatpush.bf16.msra.mxu0 %v169
    %193 = vmatmul.bf16.gmra.mxu0 %v120
    %v194 = vpop.f32.mrf.mxu0
    %v195 = vadd.f32 0.0, %v194
    %v196 = vpop.f32.mrf.mxu0
    %v197 = vadd.f32 0.0, %v196
    %198 = vdwg.mxu0
    %v199 = vadd.f32 %v118, %v195
    %v200 = vadd.f32 %v119, %v197
    %201 = vst [vmem:[#allocation2] sm:$0xff] %v199
    %202 = vst [vmem:[#allocation2 + $0x8] sm:$0xff] %v200
    // Predicated region
    $region38: #{tpu_custom_call.1} parent=1 // pred_check
      %p203 = pneg %p69
    $region39: #{tpu_custom_call.1} parent=1 // pred_check_branch
      %205 = sbr.rel (%p203) target = $region41
    $region40: #{tpu_custom_call.1} parent=1 // pred_region
      %v206 = vld [vmem:[#allocation2] sm:$0xff]
      %v207 = vld [vmem:[#allocation2 + $0x8] sm:$0xff]
      %v208 = vld [vmem:[%s4] sm:$0x1]
      %v210 = vperm.slane %v208, 0
      %v212 = vadd.f32 %v206, %v210
      %v213 = vadd.f32 %v207, %v210
      %214 = vst [vmem:[#allocation9] sm:$0xff] %v212
      %215 = vst [vmem:[#allocation9 + $0x8] sm:$0xff] %v213
    $region41: #{tpu_custom_call.1} parent=1 // pred_fallthru
      _
    // Predicated region
    $region42: #{tpu_custom_call.1} parent=1 // pred_check
      _
    $region43: #{tpu_custom_call.1} parent=1 // pred_check_branch
      %217 = sbr.rel (0) target = $region45
    $region44: #{tpu_custom_call.1} parent=1 // pred_region
      %219 = vsyncadd [#allocation5], 0
      %s220 = sshll.u32 [#allocation9], 4
      %s221 = int_to_ptr.vmem [resolvable:$true] %s220
      %s222 = sshll.u32 %s5, 4
      %s223 = int_to_ptr.hbm [resolvable:$true] %s222
      %228 = dma.vmem_to_hbm [thread:$0]  %s221, 256, %s223, [#allocation5], 128, 128, 8
    $region45: #{tpu_custom_call.1} parent=1 // pred_fallthru
      _
    // Predicated region
    $region46: #{tpu_custom_call.1} parent=1 // pred_check
      _
    $region47: #{tpu_custom_call.1} parent=1 // pred_check_branch
      %230 = sbr.rel (0) target = $region49
    $region48: #{tpu_custom_call.1} parent=1 // pred_region
      %232 = dma.done [#allocation5], 256
    $region49: #{tpu_custom_call.1} parent=1 // pred_fallthru
      _
    %233 = vsyncpa [#allocation4], 1
    %234 = vsyncpa [#allocation7], 1
    %235 = vsyncpa [#allocation5], 1

// kernel: tpu_custom_call.1
$region0: #{tpu_custom_call.1}
  #allocation0 [shape = 'u32[]', space=smem, size = 0x4, offset = 0x4, fixed_abs, tag = 'smem constant byte address 0x4 - core index']
  #allocation1 [shape = 'u32[72,128]{1,0:T(1,128)}', space=vmem, size = 0x9000, scoped, tag = 'internal scratch']
  #allocation2 [shape = 'f32[16,128]{1,0:T(8,128)}', space=vmem, size = 0x2000, scoped, tag = 'scratch operand']
  %s0 = inlined_call_operand.hbm [shape: f32[16,32], index: 0, kind: input, shape index: {}]
  %s1 = inlined_call_operand.hbm [shape: bf16[32,128], index: 1, kind: input, shape index: {}]
  %s2 = inlined_call_operand.vmem [shape: f32[1,128], index: 2, kind: input, shape index: {}]
  %s3 = inlined_call_operand.hbm [shape: bf16[128,128], index: 3, kind: input, shape index: {}]
  %s4 = inlined_call_operand.vmem [shape: f32[1,128], index: 4, kind: input, shape index: {}]
  %s5 = inlined_call_operand.hbm [shape: f32[16,128], index: 5, kind: output, shape index: {}]
  %s6 = sld [smem:[#allocation0]]
  $region50: #{tpu_custom_call.1} parent=0
    _
  %s8 = ssub.s32 1, %s6
  %s9 = scalar_select 0, %s8, %s6
  $region1: #{tpu_custom_call.1} parent=0
    #allocation3 [shape = 'u8[8192]{0}', space=vmem, size = 0x2000, scoped, tag = 'input window, operand 0, single buffered']
    #allocation4 [shape = 's32[1]{0}', space=sflag, size = 0x4, scoped, tag = 'scoped memory for tpu_custom_call.1']
    #allocation5 [shape = 's32[1]{0}', space=sflag, size = 0x4, scoped, tag = 'scoped memory for tpu_custom_call.1']
    #allocation6 [shape = 'u8[8192]{0}', space=vmem, size = 0x2000, scoped, tag = 'input window, operand 1, single buffered']
    #allocation7 [shape = 's32[1]{0}', space=sflag, size = 0x4, scoped, tag = 'scoped memory for tpu_custom_call.1']
    #allocation8 [shape = 'u8[32768]{0}', space=vmem, size = 0x8000, scoped, tag = 'input window, operand 3, single buffered']
    #allocation9 [shape = 'u8[8192]{0}', space=vmem, size = 0x2000, scoped, tag = 'output window, operand 0, single buffered']
    %10 = vsyncpa [#allocation4], 0
    %11 = vsyncpa [#allocation7], 0
    %12 = vsyncpa [#allocation5], 0
    // Predicated region
    $region2: #{tpu_custom_call.1} parent=1 // pred_check
      _
    $region3: #{tpu_custom_call.1} parent=1 // pred_check_branch
      %14 = sbr.rel (0) target = $region5
    $region4: #{tpu_custom_call.1} parent=1 // pred_region
      %16 = vsyncadd [#allocation4], 0
      %s17 = sshll.u32 %s0, 4
      %s18 = int_to_ptr.hbm [resolvable:$true] %s17
      %s19 = sshll.u32 [#allocation3], 4
      %s20 = int_to_ptr.vmem [resolvable:$true] %s19
      %25 = dma.hbm_to_vmem [thread:$0]  %s18, 256, %s20, [#allocation4], 128, 128, 8
    $region5: #{tpu_custom_call.1} parent=1 // pred_fallthru
      _
    // Predicated region
    $region6: #{tpu_custom_call.1} parent=1 // pred_check
      _
    $region7: #{tpu_custom_call.1} parent=1 // pred_check_branch
      %27 = sbr.rel (0) target = $region9
    $region8: #{tpu_custom_call.1} parent=1 // pred_region
      %29 = vsyncadd [#allocation7], 0
      %s30 = sshll.u32 %s1, 4
      %s31 = int_to_ptr.hbm [resolvable:$true] %s30
      %s32 = sshll.u32 [#allocation6], 4
      %s33 = int_to_ptr.vmem [resolvable:$true] %s32
      %38 = dma.hbm_to_vmem [thread:$0]  %s31, 256, %s33, [#allocation7], 64, 64, 4
    $region9: #{tpu_custom_call.1} parent=1 // pred_fallthru
      _
    // Predicated region
    $region10: #{tpu_custom_call.1} parent=1 // pred_check
      _
    $region11: #{tpu_custom_call.1} parent=1 // pred_check_branch
      %40 = sbr.rel (0) target = $region13
    $region12: #{tpu_custom_call.1} parent=1 // pred_region
      _
    $region13: #{tpu_custom_call.1} parent=1 // pred_fallthru
      _
    // Predicated region
    $region14: #{tpu_custom_call.1} parent=1 // pred_check
      _
    $region15: #{tpu_custom_call.1} parent=1 // pred_check_branch
      %42 = sbr.rel (0) target = $region17
    $region16: #{tpu_custom_call.1} parent=1 // pred_region
      %44 = vsyncadd [#allocation7], 0
      %s45 = sshll.u32 %s3, 4
      %s46 = int_to_ptr.hbm [resolvable:$true] %s45
      %s47 = sshll.u32 [#allocation8], 4
      %s48 = int_to_ptr.vmem [resolvable:$true] %s47
      %53 = dma.hbm_to_vmem [thread:$0]  %s46, 1024, %s48, [#allocation7], 64, 64, 4
    $region17: #{tpu_custom_call.1} parent=1 // pred_fallthru
      _
    // Predicated region
    $region18: #{tpu_custom_call.1} parent=1 // pred_check
      _
    $region19: #{tpu_custom_call.1} parent=1 // pred_check_branch
      %55 = sbr.rel (0) target = $region21
    $region20: #{tpu_custom_call.1} parent=1 // pred_region
      _
    $region21: #{tpu_custom_call.1} parent=1 // pred_fallthru
      _
    // Predicated region
    $region22: #{tpu_custom_call.1} parent=1 // pred_check
      _
    $region23: #{tpu_custom_call.1} parent=1 // pred_check_branch
      %57 = sbr.rel (0) target = $region25
    $region24: #{tpu_custom_call.1} parent=1 // pred_region
      %59 = dma.done [#allocation4], 256
    $region25: #{tpu_custom_call.1} parent=1 // pred_fallthru
      _
    // Predicated region
    $region26: #{tpu_custom_call.1} parent=1 // pred_check
      _
    $region27: #{tpu_custom_call.1} parent=1 // pred_check_branch
      %61 = sbr.rel (0) target = $region29
    $region28: #{tpu_custom_call.1} parent=1 // pred_region
      %63 = dma.done [#allocation7], 256
    $region29: #{tpu_custom_call.1} parent=1 // pred_fallthru
      _
    // Predicated region
    $region30: #{tpu_custom_call.1} parent=1 // pred_check
      _
    $region31: #{tpu_custom_call.1} parent=1 // pred_check_branch
      %65 = sbr.rel (0) target = $region33
    $region32: #{tpu_custom_call.1} parent=1 // pred_region
      %67 = dma.done [#allocation7], 1024
    $region33: #{tpu_custom_call.1} parent=1 // pred_fallthru
      _
    %p69 = scmp.eq.s32.totalorder 0, 0
    // Predicated region
    $region34: #{tpu_custom_call.1} parent=1 // pred_check
      %p70 = pneg %p69
    $region35: #{tpu_custom_call.1} parent=1 // pred_check_branch
      %72 = sbr.rel (%p70) target = $region37
    $region36: #{tpu_custom_call.1} parent=1 // pred_region
      %73 = vst [vmem:[#allocation2] sm:$0xff] 0.0
      %74 = vst [vmem:[#allocation2 + $0x8] sm:$0xff] 0.0
    $region37: #{tpu_custom_call.1} parent=1 // pred_fallthru
      _
    %v75 = vld [vmem:[#allocation3] sm:$0xff]
    %v76 = vld [vmem:[#allocation3 + $0x8] sm:$0xff]
    %v77 = vpack.c.bf16 %v76, %v75
    %v78 = vld [vmem:[#allocation6] sm:$0xf]
    %v79 = vld [vmem:[#allocation6 + $0x4] sm:$0xf]
    %v80 = vld [vmem:[#allocation6 + $0x8] sm:$0xf]
    %v81 = vld [vmem:[#allocation6 + $0xc] sm:$0xf]
    %v82 = vld [vmem:[%s2] sm:$0x1]
    %v84 = vperm.slane %v82, 0
    %v90 = vunpack.c.l.b16 %v78
    %v91 = vunpack.c.l.b16 %v79
    %v92 = vunpack.c.l.b16 %v80
    %v93 = vunpack.c.l.b16 %v81
    %v94 = vpack.c.b16 %v91, %v90
    %v95 = vpack.c.b16 %v93, %v92
    %vm98 = vcmask 261120
    %v100 = vsel %vm98, %v77, 0
    %102 = vmatpush.bf16.msra.mxu0 0
    %103 = vmatpush.bf16.msra.mxu0 0
    %104 = vmatpush.bf16.msra.mxu0 0
    %105 = vmatpush.bf16.msra.mxu0 0
    %106 = vmatpush.bf16.msra.mxu0 0
    %107 = vmatpush.bf16.msra.mxu0 0
    %108 = vmatpush.bf16.msra.mxu0 %v95
    %109 = vmatpush.bf16.msra.mxu0 %v94
    %110 = vmatmul.bf16.gmra.mxu0 %v100
    %v111 = vpop.f32.mrf.mxu0
    %v112 = vadd.f32 %v84, %v111
    %v113 = vpop.f32.mrf.mxu0
    %v114 = vadd.f32 %v84, %v113
    %115 = vdwg.mxu0
    %v116 = vtanh.pop %v112
    %v117 = vtanh.pop %v114
    %v118 = vld [vmem:[#allocation2] sm:$0xff]
    %v119 = vld [vmem:[#allocation2 + $0x8] sm:$0xff]
    %v120 = vpack.c.bf16 %v117, %v116
    %v121 = vld [vmem:[#allocation8] sm:$0xf]
    %v122 = vld [vmem:[#allocation8 + $0x4] sm:$0xf]
    %v123 = vld [vmem:[#allocation8 + $0x8] sm:$0xf]
    %v124 = vld [vmem:[#allocation8 + $0xc] sm:$0xf]
    %v125 = vld [vmem:[#allocation8 + $0x10] sm:$0xf]
    %v126 = vld [vmem:[#allocation8 + $0x14] sm:$0xf]
    %v127 = vld [vmem:[#allocation8 + $0x18] sm:$0xf]
    %v128 = vld [vmem:[#allocation8 + $0x1c] sm:$0xf]
    %v129 = vld [vmem:[#allocation8 + $0x20] sm:$0xf]
    %v130 = vld [vmem:[#allocation8 + $0x24] sm:$0xf]
    %v131 = vld [vmem:[#allocation8 + $0x28] sm:$0xf]
    %v132 = vld [vmem:[#allocation8 + $0x2c] sm:$0xf]
    %v133 = vld [vmem:[#allocation8 + $0x30] sm:$0xf]
    %v134 = vld [vmem:[#allocation8 + $0x34] sm:$0xf]
    %v135 = vld [vmem:[#allocation8 + $0x38] sm:$0xf]
    %v136 = vld [vmem:[#allocation8 + $0x3c] sm:$0xf]
    %v153 = vunpack.c.l.b16 %v121
    %v154 = vunpack.c.l.b16 %v122
    %v155 = vunpack.c.l.b16 %v123
    %v156 = vunpack.c.l.b16 %v124
    %v157 = vunpack.c.l.b16 %v125
    %v158 = vunpack.c.l.b16 %v126
    %v159 = vunpack.c.l.b16 %v127
    %v160 = vunpack.c.l.b16 %v128
    %v161 = vunpack.c.l.b16 %v129
    %v162 = vunpack.c.l.b16 %v130
    %v163 = vunpack.c.l.b16 %v131
    %v164 = vunpack.c.l.b16 %v132
    %v165 = vunpack.c.l.b16 %v133
    %v166 = vunpack.c.l.b16 %v134
    %v167 = vunpack.c.l.b16 %v135
    %v168 = vunpack.c.l.b16 %v136
    %v169 = vpack.c.b16 %v154, %v153
    %v170 = vpack.c.b16 %v156, %v155
    %v171 = vpack.c.b16 %v158, %v157
    %v172 = vpack.c.b16 %v160, %v159
    %v173 = vpack.c.b16 %v162, %v161
    %v174 = vpack.c.b16 %v164, %v163
    %v175 = vpack.c.b16 %v166, %v165
    %v176 = vpack.c.b16 %v168, %v167
    %185 = vmatpush.bf16.msra.mxu0 %v176
    %186 = vmatpush.bf16.msra.mxu0 %v175
    %187 = vmatpush.bf16.msra.mxu0 %v174
    %188 = vmatpush.bf16.msra.mxu0 %v173
    %189 = vmatpush.bf16.msra.mxu0 %v172
    %190 = vmatpush.bf16.msra.mxu0 %v171
    %191 = vmatpush.bf16.msra.mxu0 %v170
    %192 = vmatpush.bf16.msra.mxu0 %v169
    %193 = vmatmul.bf16.gmra.mxu0 %v120
    %v194 = vpop.f32.mrf.mxu0
    %v195 = vadd.f32 0.0, %v194
    %v196 = vpop.f32.mrf.mxu0
    %v197 = vadd.f32 0.0, %v196
    %198 = vdwg.mxu0
    %v199 = vadd.f32 %v118, %v195
    %v200 = vadd.f32 %v119, %v197
    %201 = vst [vmem:[#allocation2] sm:$0xff] %v199
    %202 = vst [vmem:[#allocation2 + $0x8] sm:$0xff] %v200
    // Predicated region
    $region38: #{tpu_custom_call.1} parent=1 // pred_check
      %p203 = pneg %p69
    $region39: #{tpu_custom_call.1} parent=1 // pred_check_branch
      %205 = sbr.rel (%p203) target = $region41
    $region40: #{tpu_custom_call.1} parent=1 // pred_region
      %v206 = vld [vmem:[#allocation2] sm:$0xff]
      %v207 = vld [vmem:[#allocation2 + $0x8] sm:$0xff]
      %v208 = vld [vmem:[%s4] sm:$0x1]
      %v210 = vperm.slane %v208, 0
      %v212 = vadd.f32 %v206, %v210
      %v213 = vadd.f32 %v207, %v210
      %214 = vst [vmem:[#allocation9] sm:$0xff] %v212
      %215 = vst [vmem:[#allocation9 + $0x8] sm:$0xff] %v213
    $region41: #{tpu_custom_call.1} parent=1 // pred_fallthru
      _
    // Predicated region
    $region42: #{tpu_custom_call.1} parent=1 // pred_check
      _
    $region43: #{tpu_custom_call.1} parent=1 // pred_check_branch
      %217 = sbr.rel (0) target = $region45
    $region44: #{tpu_custom_call.1} parent=1 // pred_region
      %219 = vsyncadd [#allocation5], 0
      %s220 = sshll.u32 [#allocation9], 4
      %s221 = int_to_ptr.vmem [resolvable:$true] %s220
      %s222 = sshll.u32 %s5, 4
      %s223 = int_to_ptr.hbm [resolvable:$true] %s222
      %228 = dma.vmem_to_hbm [thread:$0]  %s221, 256, %s223, [#allocation5], 128, 128, 8
    $region45: #{tpu_custom_call.1} parent=1 // pred_fallthru
      _
    // Predicated region
    $region46: #{tpu_custom_call.1} parent=1 // pred_check
      _
    $region47: #{tpu_custom_call.1} parent=1 // pred_check_branch
      %230 = sbr.rel (0) target = $region49
    $region48: #{tpu_custom_call.1} parent=1 // pred_region
      %232 = dma.done [#allocation5], 256
    $region49: #{tpu_custom_call.1} parent=1 // pred_fallthru
      _
    %233 = vsyncpa [#allocation4], 1
    %234 = vsyncpa [#allocation7], 1
    %235 = vsyncpa [#allocation5], 1

</llo_original>
